<compile_context>
chip_gen: v7x
topology: tpu7x:2x2x1
jax: 0.10.0
libtpu: 0.0.40
codegen_flags: <defaults>
</compile_context>

<pallas_src>
import functools
import math

import jax
import jax.numpy as jnp
from jax.experimental import pallas as pl
from jax.experimental.pallas import tpu as pltpu


def _round_up(x, m):
    return (x + m - 1) // m * m


# ---------------------------------------------------------------------------
# Pallas kernel: (patches @ W1 + b1) -> [LayerNorm] -> [GELU] -> [@ W2]
# ---------------------------------------------------------------------------
def _simple_patch_kernel(*refs, second_matmul, with_norm, use_ge, e_true,
                         eps=1e-5):
    out_ref = refs[-1]
    patches_ref, w1_ref, b1_ref = refs[0], refs[1], refs[2]
    idx = 3

    # Conv2d expressed as matmul over im2col patches (bf16 MXU, f32 accumulate).
    h = jnp.dot(patches_ref[...], w1_ref[...],
                preferred_element_type=jnp.float32)
    h = h + b1_ref[...]                                   # (TM, E_pad), f32

    if second_matmul:
        if with_norm:
            gamma_ref, beta_ref = refs[idx], refs[idx + 1]
            idx += 2
            # LayerNorm over the *true* (unpadded) embed dim.  Padded columns
            # of h are exactly zero (zero-padded W1 columns / bias), so sums
            # over the padded width equal sums over the true columns.
            inv_e = 1.0 / e_true
            mean = jnp.sum(h, axis=-1, keepdims=True) * inv_e
            var = jnp.sum(h * h, axis=-1, keepdims=True) * inv_e - mean * mean
            var = jnp.maximum(var, 0.0)       # one-pass form can round < 0
            h = (h - mean) * jax.lax.rsqrt(var + eps)
            h = h * gamma_ref[...] + beta_ref[...]        # padded gamma/beta = 0
        if use_ge:
            # GELU, tanh approximation (runs on the EUP slot, essentially free
            # next to the MXU work).  torch nn.GELU() default is the exact erf
            # form; the approximation differs by < ~1e-3, inside tolerance.
            # TODO(synk): switch to erf if bit-exact GELU is required.
            c = math.sqrt(2.0 / math.pi)
            h = 0.5 * h * (1.0 + jnp.tanh(c * (h + 0.044715 * h * h * h)))
        w2_ref = refs[idx]
        h = jnp.dot(h.astype(w2_ref.dtype), w2_ref[...],
                    preferred_element_type=jnp.float32)

    out_ref[...] = h.astype(out_ref.dtype)


# ---------------------------------------------------------------------------
# Patch extraction (pure data movement, outside the kernel)
# ---------------------------------------------------------------------------
def _extract_patches(x, ksize, stride, pad):
    """x: (B, C, H, W) -> (B, P, C*k*k); column order = (c, kh, kw)."""
    B, C, H, W = x.shape
    if pad == 0 and stride == ksize and H % ksize == 0 and W % ksize == 0:
        # Non-overlapping patch embed: pure reshape/transpose, no gather/conv.
        oh, ow = H // ksize, W // ksize
        p = x.reshape(B, C, oh, ksize, ow, ksize)
        p = p.transpose(0, 2, 4, 1, 3, 5)                 # (B, oh, ow, C, kh, kw)
        return p.reshape(B, oh * ow, C * ksize * ksize)
    # General (overlapping / padded) case: XLA's patch-extraction conv.
    # Output channel order is (c, kh, kw) == OIHW weight flattening.
    p = jax.lax.conv_general_dilated_patches(
        x, (ksize, ksize), (stride, stride),
        padding=[(pad, pad), (pad, pad)],
        dimension_numbers=("NCHW", "OIHW", "NCHW"),
        precision=jax.lax.Precision.HIGHEST)              # exact copy of values
    Bp, Kp, oh, ow = p.shape
    return p.transpose(0, 2, 3, 1).reshape(Bp, oh * ow, Kp)


# ---------------------------------------------------------------------------
# Wrapper: parameter prep, padding, tiling, pallas_call
# ---------------------------------------------------------------------------
def simple_patch_forward(x, params, cfg):
    img_size = cfg["img_size"]
    patch_size = cfg["patch_size"]
    patch_count = cfg["patch_count"]
    another_linear = cfg["another_linear"]
    with_norm = cfg["with_norm"] and another_linear
    use_ge = cfg["use_ge"] and another_linear

    # 3-D token input handling, same as the torch module.
    if x.ndim == 3:
        B = x.shape[0]
        assert x.shape[1] == img_size * img_size
        x = x.reshape(B, img_size, img_size, -1).transpose(0, 3, 1, 2)
    B, C, H, W = x.shape
    assert H == img_size and W == img_size

    stride = img_size // patch_count
    pad = (stride * (patch_count - 1) + patch_size - img_size) // 2

    # Cast to bf16 *before* im2col / padding: the extraction / pad passes then
    # move 2-byte elements (values land in bf16 for the MXU either way).
    patches = _extract_patches(x.astype(jnp.bfloat16), patch_size, stride, pad)
    P, K = patches.shape[1], patches.shape[2]             # (B, P, K) bf16
    assert P == patch_count * patch_count
    M = B * P

    # ---- parameter prep ----------------------------------------------------
    E = params["w_conv"].shape[0]
    W1 = params["w_conv"].reshape(E, K).T.astype(jnp.float32)  # (K, E)
    b1 = params["b_conv"].reshape(1, E).astype(jnp.float32)

    # GEMM pre-fusion: with no norm / activation in between, the conv matmul
    # and the offset Linear collapse algebraically into a single matmul.
    second_matmul = another_linear and (with_norm or use_ge)
    if another_linear:
        W2 = params["w_off"].T.astype(jnp.float32)              # (E, O)
        out_dim = W2.shape[1]
        if not second_matmul:
            with jax.default_matmul_precision("highest"):
                W1 = W1 @ W2                                    # (K, O)
                b1 = b1 @ W2                                    # (1, O)
    else:
        out_dim = E

    e_first = E if second_matmul else out_dim       # first matmul output dim
    K_pad = _round_up(K, 128)                       # lane-dense LHS / whole K steps
    E_pad = _round_up(e_first, 128)                 # lane-dense intermediate
    O_pad = _round_up(out_dim, 128) if second_matmul else E_pad
    out_pad = O_pad if second_matmul else E_pad

    # Zero-pad feature + contraction dims up to lane width (128).
    W1 = jnp.pad(W1, ((0, K_pad - K), (0, E_pad - e_first))).astype(jnp.bfloat16)
    b1 = jnp.pad(b1, ((0, 0), (0, E_pad - e_first)))            # f32

    # ---- row tiling ---------------------------------------------------------
    # Two-matmul path: the (TM, E_pad) f32 intermediate is live from bias-add
    # through LayerNorm/GELU into the second GEMM; keep it <= ~512 KiB so it
    # does not spill out of the vreg file (worst on v5e, single store slot).
    # Pre-fused single-matmul path is memory-bound: larger tiles amortize the
    # per-grid-step overhead and push toward the HBM roofline.
    if second_matmul:
        TM = 256 if E_pad <= 512 else 128
    else:
        TM = 512
    # Shrink for tiny M so we do not over-pad rows (TM stays a multiple of 8).
    while TM > 8 and TM > _round_up(M, 8):
        TM //= 2
    # v7x has 2 TensorCores: make sure the "parallel" axis has >= 2 steps.
    if _round_up(M, TM) // TM < 2 and TM > 8:
        TM //= 2
    M_pad = _round_up(M, TM)
    grid = (M_pad // TM,)

    patches2d = patches.reshape(M, K)
    patches2d = jnp.pad(patches2d, ((0, M_pad - M), (0, K_pad - K)))  # bf16

    inputs = [patches2d, W1, b1]
    in_specs = [
        pl.BlockSpec((TM, K_pad), lambda i: (i, 0)),
        pl.BlockSpec((K_pad, E_pad), lambda i: (0, 0)),
        pl.BlockSpec((1, E_pad), lambda i: (0, 0)),
    ]
    # Actual VMEM footprint (assume 2 buffers per input/output to be safe).
    vmem_bytes = (2 * TM * K_pad * 2          # patches tile, bf16
                  + 2 * TM * out_pad * 2      # bf16 output tile
                  + 2 * K_pad * E_pad * 2     # W1 (constant block)
                  + 2 * E_pad * 4)            # b1
    if second_matmul:
        if with_norm:
            gamma = jnp.pad(params["gamma"].reshape(1, E).astype(jnp.float32),
                            ((0, 0), (0, E_pad - E)))
            beta = jnp.pad(params["beta"].reshape(1, E).astype(jnp.float32),
                           ((0, 0), (0, E_pad - E)))
            inputs += [gamma, beta]
            in_specs += [pl.BlockSpec((1, E_pad), lambda i: (0, 0)),
                         pl.BlockSpec((1, E_pad), lambda i: (0, 0))]
            vmem_bytes += 2 * 2 * E_pad * 4
        W2p = jnp.pad(W2, ((0, E_pad - E), (0, O_pad - out_dim)))
        inputs += [W2p.astype(jnp.bfloat16)]
        in_specs += [pl.BlockSpec((E_pad, O_pad), lambda i: (0, 0))]
        vmem_bytes += 2 * E_pad * O_pad * 2
        vmem_bytes += TM * E_pad * 4          # spill headroom for h
    # Right-sized scoped-VMEM reservation: 2x footprint + 4 MiB headroom for
    # Mosaic internal scratch, capped well below v7x's 64 MiB physical VMEM.
    vmem_limit = int(min(2 * vmem_bytes + 4 * 1024 * 1024, 64 * 1024 * 1024))

    # Advisory cost estimate so XLA schedules the patch extraction around it.
    flops = 2 * M_pad * K_pad * E_pad
    if second_matmul:
        flops += 2 * M_pad * E_pad * O_pad
    transc = M_pad * E_pad if use_ge else 0
    bytes_acc = int(sum(int(a.size) * a.dtype.itemsize for a in inputs)
                    + M_pad * out_pad * 2)

    kernel = functools.partial(
        _simple_patch_kernel, second_matmul=second_matmul, with_norm=with_norm,
        use_ge=use_ge, e_true=e_first)

    # bf16 output: out_dim is tiny but padded to a lane-dense 128, so the
    # padded store dominates HBM traffic on the mem-bound fused path; bf16
    # halves writeback bytes / vst pressure.  Cast back to f32 after un-pad.
    out2d = pl.pallas_call(
        kernel,
        out_shape=jax.ShapeDtypeStruct((M_pad, out_pad), jnp.bfloat16),
        grid=grid,
        in_specs=in_specs,
        out_specs=pl.BlockSpec((TM, out_pad), lambda i: (i, 0)),
        compiler_params=pltpu.CompilerParams(
            dimension_semantics=("parallel",),
            vmem_limit_bytes=vmem_limit),
        cost_estimate=pl.CostEstimate(
            flops=flops, transcendentals=transc, bytes_accessed=bytes_acc),
    )(*inputs)

    pred_offset = out2d[:M, :out_dim].astype(jnp.float32).reshape(B, P, out_dim)
    # TODO(synk): self.get_output(img, pred_offset, model_offset) is only
    # defined in the Simple_DePatch subclass (deformable sampling), not in
    # Simple_Patch; we return pred_offset directly alongside the patch grid.
    return pred_offset, (patch_count, patch_count)


# ---------------------------------------------------------------------------
# Pure-JAX reference (uses lax conv) for correctness checking
# ---------------------------------------------------------------------------
def reference_forward(x, params, cfg):
    stride = cfg["img_size"] // cfg["patch_count"]
    pad = (stride * (cfg["patch_count"] - 1) + cfg["patch_size"]
           - cfg["img_size"]) // 2
    with jax.default_matmul_precision("highest"):
        y = jax.lax.conv_general_dilated(
            x, params["w_conv"], window_strides=(stride, stride),
            padding=[(pad, pad), (pad, pad)],
            dimension_numbers=("NCHW", "OIHW", "NCHW"),
            precision=jax.lax.Precision.HIGHEST)
        y = y + params["b_conv"][None, :, None, None]
        B, E, Ph, Pw = y.shape
        y = y.reshape(B, E, Ph * Pw).transpose(0, 2, 1)        # (B, P, E)
        if cfg["another_linear"] and cfg["with_norm"]:
            mean = y.mean(-1, keepdims=True)
            var = ((y - mean) ** 2).mean(-1, keepdims=True)
            y = (y - mean) / jnp.sqrt(var + 1e-5)
            y = y * params["gamma"] + params["beta"]
        if cfg["another_linear"]:
            if cfg["use_ge"]:
                y = jax.nn.gelu(y, approximate=False)          # torch default
            y = y @ params["w_off"].T
    return y


def init_params(key, cfg):
    ks = jax.random.split(key, 5)
    E = cfg["embed_dim"] if cfg["another_linear"] else cfg["offset_embed"]
    C, k = cfg["in_chans"], cfg["patch_size"]
    p = {
        "w_conv": 0.02 * jax.random.normal(ks[0], (E, C, k, k), jnp.float32),
        "b_conv": 0.02 * jax.random.normal(ks[1], (E,), jnp.float32),
    }
    if cfg["another_linear"]:
        p["w_off"] = 0.02 * jax.random.normal(
            ks[2], (cfg["offset_embed"], E), jnp.float32)   # torch Linear (out, in)
        if cfg["with_norm"]:
            p["gamma"] = 1.0 + 0.1 * jax.random.normal(ks[3], (E,), jnp.float32)
            p["beta"] = 0.1 * jax.random.normal(ks[4], (E,), jnp.float32)
    return p


if __name__ == "__main__":
    key = jax.random.PRNGKey(0)

    base = dict(img_size=16, patch_size=4, patch_count=4, in_chans=4,
                embed_dim=32, offset_embed=8)
    cfgs = [
        # LayerNorm + second linear (two-matmul path).
        dict(base, another_linear=True, use_ge=False, with_norm=True),
        # No norm / no GELU -> GEMM pre-fusion path (single matmul).
        dict(base, another_linear=True, use_ge=False, with_norm=False),
        # Overlapping patches (stride < kernel, ragged K=144) + LayerNorm + GELU.
        dict(base, patch_size=6, another_linear=True, use_ge=True,
             with_norm=True),
        # another_linear=False: conv projection straight to offset_embed.
        dict(base, another_linear=False, use_ge=False, with_norm=False),
    ]

    for ci, cfg in enumerate(cfgs):
        params = init_params(jax.random.fold_in(key, ci), cfg)
        x = jax.random.normal(
            jax.random.fold_in(key, 100 + ci),
            (2, cfg["in_chans"], cfg["img_size"], cfg["img_size"]),
            jnp.float32)

        pred_offset, grid_hw = simple_patch_forward(x, params, cfg)
        pred_offset = jax.block_until_ready(pred_offset)

        assert pred_offset.shape == (2, cfg["patch_count"] ** 2,
                                     cfg["offset_embed"]), pred_offset.shape
        assert grid_hw == (cfg["patch_count"], cfg["patch_count"])

        ref = reference_forward(x, params, cfg)
        err = float(jnp.max(jnp.abs(pred_offset - ref)))
        assert jnp.allclose(pred_offset, ref, rtol=1e-2, atol=1e-2), (ci, err)

    print("KERNEL_OK")
</pallas_src>

<mosaic_0001>
module attributes {stable_mosaic.version = 11 : i64} {
  func.func @_simple_patch_kernel(%arg0: i32, %arg1: memref<16x128xbf16, #tpu.memory_space<vmem>>, %arg2: memref<128x128xbf16, #tpu.memory_space<vmem>>, %arg3: memref<1x128xf32, #tpu.memory_space<vmem>>, %arg4: memref<1x128xf32, #tpu.memory_space<vmem>>, %arg5: memref<1x128xf32, #tpu.memory_space<vmem>>, %arg6: memref<128x128xbf16, #tpu.memory_space<vmem>>, %arg7: memref<16x128xbf16, #tpu.memory_space<vmem>>) attributes {dimension_semantics = [#tpu.dimension_semantics<parallel>], iteration_bounds = array<i64: 2>, scalar_prefetch = 0 : i64, scratch_operands = 0 : i64, tpu.core_type = #tpu.core_type<tc>, window_params = [{transform_indices = @transform_0, window_bounds = array<i64: 16, 128>}, {pipeline_mode = #tpu.pipeline_mode<synchronous>, transform_indices = @transform_1, window_bounds = array<i64: 128, 128>}, {pipeline_mode = #tpu.pipeline_mode<synchronous>, transform_indices = @transform_2, window_bounds = array<i64: 1, 128>}, {pipeline_mode = #tpu.pipeline_mode<synchronous>, transform_indices = @transform_3, window_bounds = array<i64: 1, 128>}, {pipeline_mode = #tpu.pipeline_mode<synchronous>, transform_indices = @transform_4, window_bounds = array<i64: 1, 128>}, {pipeline_mode = #tpu.pipeline_mode<synchronous>, transform_indices = @transform_5, window_bounds = array<i64: 128, 128>}, {transform_indices = @transform_6, window_bounds = array<i64: 16, 128>}]} {
    %c0 = arith.constant 0 : index
    %c0_0 = arith.constant 0 : index
    %0 = vector.load %arg1[%c0, %c0_0] : memref<16x128xbf16, #tpu.memory_space<vmem>>, vector<16x128xbf16>
    %c0_1 = arith.constant 0 : index
    %c0_2 = arith.constant 0 : index
    %1 = vector.load %arg2[%c0_1, %c0_2] : memref<128x128xbf16, #tpu.memory_space<vmem>>, vector<128x128xbf16>
    %cst = arith.constant dense<0.000000e+00> : vector<16x128xf32>
    %2 = tpu.matmul %0, %1, %cst {dimension_numbers = #tpu.dot_dimension_numbers<[1], [0], [0], [1], [0, 0, 1, 1], [], []>} : vector<16x128xbf16>, vector<128x128xbf16>, vector<16x128xf32> -> vector<16x128xf32>
    %c0_3 = arith.constant 0 : index
    %c0_4 = arith.constant 0 : index
    %3 = vector.load %arg3[%c0_3, %c0_4] : memref<1x128xf32, #tpu.memory_space<vmem>>, vector<1x128xf32>
    %4 = vector.broadcast %3 : vector<1x128xf32> to vector<16x128xf32>
    %5 = arith.addf %2, %4 : vector<16x128xf32>
    %cst_5 = arith.constant dense<0.000000e+00> : vector<16xf32>
    %6 = vector.multi_reduction <add>, %5, %cst_5 [1] : vector<16x128xf32> to vector<16xf32>
    %7 = vector.shape_cast %6 : vector<16xf32> to vector<16x1xf32>
    %cst_6 = arith.constant 3.125000e-02 : f32
    %8 = vector.broadcast %cst_6 : f32 to vector<16x1xf32>
    %9 = arith.mulf %7, %8 : vector<16x1xf32>
    %10 = arith.mulf %5, %5 : vector<16x128xf32>
    %cst_7 = arith.constant dense<0.000000e+00> : vector<16xf32>
    %11 = vector.multi_reduction <add>, %10, %cst_7 [1] : vector<16x128xf32> to vector<16xf32>
    %12 = vector.shape_cast %11 : vector<16xf32> to vector<16x1xf32>
    %cst_8 = arith.constant 3.125000e-02 : f32
    %13 = vector.broadcast %cst_8 : f32 to vector<16x1xf32>
    %14 = arith.mulf %12, %13 : vector<16x1xf32>
    %15 = arith.mulf %9, %9 : vector<16x1xf32>
    %16 = arith.subf %14, %15 : vector<16x1xf32>
    %cst_9 = arith.constant 0.000000e+00 : f32
    %17 = vector.broadcast %cst_9 : f32 to vector<16x1xf32>
    %18 = arith.maximumf %16, %17 : vector<16x1xf32>
    %19 = vector.broadcast %9 : vector<16x1xf32> to vector<16x128xf32>
    %20 = arith.subf %5, %19 : vector<16x128xf32>
    %cst_10 = arith.constant 9.99999974E-6 : f32
    %21 = vector.broadcast %cst_10 : f32 to vector<16x1xf32>
    %22 = arith.addf %18, %21 : vector<16x1xf32>
    %23 = math.rsqrt %22 : vector<16x1xf32>
    %24 = vector.broadcast %23 : vector<16x1xf32> to vector<16x128xf32>
    %25 = arith.mulf %20, %24 : vector<16x128xf32>
    %c0_11 = arith.constant 0 : index
    %c0_12 = arith.constant 0 : index
    %26 = vector.load %arg4[%c0_11, %c0_12] : memref<1x128xf32, #tpu.memory_space<vmem>>, vector<1x128xf32>
    %27 = vector.broadcast %26 : vector<1x128xf32> to vector<16x128xf32>
    %28 = arith.mulf %25, %27 : vector<16x128xf32>
    %c0_13 = arith.constant 0 : index
    %c0_14 = arith.constant 0 : index
    %29 = vector.load %arg5[%c0_13, %c0_14] : memref<1x128xf32, #tpu.memory_space<vmem>>, vector<1x128xf32>
    %30 = vector.broadcast %29 : vector<1x128xf32> to vector<16x128xf32>
    %31 = arith.addf %28, %30 : vector<16x128xf32>
    %32 = arith.truncf %31 : vector<16x128xf32> to vector<16x128xbf16>
    %c0_15 = arith.constant 0 : index
    %c0_16 = arith.constant 0 : index
    %33 = vector.load %arg6[%c0_15, %c0_16] : memref<128x128xbf16, #tpu.memory_space<vmem>>, vector<128x128xbf16>
    %cst_17 = arith.constant dense<0.000000e+00> : vector<16x128xf32>
    %34 = tpu.matmul %32, %33, %cst_17 {dimension_numbers = #tpu.dot_dimension_numbers<[1], [0], [0], [1], [0, 0, 1, 1], [], []>} : vector<16x128xbf16>, vector<128x128xbf16>, vector<16x128xf32> -> vector<16x128xf32>
    %35 = arith.truncf %34 : vector<16x128xf32> to vector<16x128xbf16>
    %c0_18 = arith.constant 0 : index
    %c0_19 = arith.constant 0 : index
    %36 = vector.load %arg7[%c0_18, %c0_19] : memref<16x128xbf16, #tpu.memory_space<vmem>>, vector<16x128xbf16>
    tpu.vector_store %arg7[%c0_18, %c0_19], %35 {strides = array<i32>} : memref<16x128xbf16, #tpu.memory_space<vmem>>, vector<16x128xbf16>,
    return
  }
  func.func @transform_0(%arg0: i32) -> (i32, i32) {
    %c0_i32 = arith.constant 0 : i32
    %c0_i32_0 = arith.constant 0 : i32
    return %arg0, %c0_i32 : i32, i32
  }
  func.func @transform_1(%arg0: i32) -> (i32, i32) {
    %c0_i32 = arith.constant 0 : i32
    %c0_i32_0 = arith.constant 0 : i32
    %c0_i32_1 = arith.constant 0 : i32
    return %c0_i32, %c0_i32_0 : i32, i32
  }
  func.func @transform_2(%arg0: i32) -> (i32, i32) {
    %c0_i32 = arith.constant 0 : i32
    %c0_i32_0 = arith.constant 0 : i32
    %c0_i32_1 = arith.constant 0 : i32
    return %c0_i32, %c0_i32_0 : i32, i32
  }
  func.func @transform_3(%arg0: i32) -> (i32, i32) {
    %c0_i32 = arith.constant 0 : i32
    %c0_i32_0 = arith.constant 0 : i32
    %c0_i32_1 = arith.constant 0 : i32
    return %c0_i32, %c0_i32_0 : i32, i32
  }
  func.func @transform_4(%arg0: i32) -> (i32, i32) {
    %c0_i32 = arith.constant 0 : i32
    %c0_i32_0 = arith.constant 0 : i32
    %c0_i32_1 = arith.constant 0 : i32
    return %c0_i32, %c0_i32_0 : i32, i32
  }
  func.func @transform_5(%arg0: i32) -> (i32, i32) {
    %c0_i32 = arith.constant 0 : i32
    %c0_i32_0 = arith.constant 0 : i32
    %c0_i32_1 = arith.constant 0 : i32
    return %c0_i32, %c0_i32_0 : i32, i32
  }
  func.func @transform_6(%arg0: i32) -> (i32, i32) {
    %c0_i32 = arith.constant 0 : i32
    %c0_i32_0 = arith.constant 0 : i32
    return %arg0, %c0_i32 : i32, i32
  }
}

</mosaic_0001>

<llo_original>
// kernel: tpu_custom_call.1
$region0: #{tpu_custom_call.1}
  #allocation0 [shape = 'u32[]', space=smem, size = 0x4, offset = 0x4, fixed_abs, tag = 'smem constant byte address 0x4 - core index']
  #allocation1 [shape = 'u32[144,128]{1,0:T(1,128)}', space=vmem, size = 0x12000, scoped, tag = 'internal scratch']
  %s0 = inlined_call_operand.hbm [shape: bf16[32,128], index: 0, kind: input, shape index: {}]
  %s1 = inlined_call_operand.hbm [shape: bf16[128,128], index: 1, kind: input, shape index: {}]
  %s2 = inlined_call_operand.vmem [shape: f32[1,128], index: 2, kind: input, shape index: {}]
  %s3 = inlined_call_operand.vmem [shape: f32[1,128], index: 3, kind: input, shape index: {}]
  %s4 = inlined_call_operand.vmem [shape: f32[1,128], index: 4, kind: input, shape index: {}]
  %s5 = inlined_call_operand.hbm [shape: bf16[128,128], index: 5, kind: input, shape index: {}]
  %s6 = inlined_call_operand.hbm [shape: bf16[32,128], index: 6, kind: output, shape index: {}]
  %s7 = sld [smem:[#allocation0]]
  $region69: #{tpu_custom_call.1} parent=0
    _
  %s9 = ssub.s32 1, %s7
  %s10 = scalar_select 0, %s9, %s7
  $region1: #{tpu_custom_call.1} parent=0
    #allocation2 [shape = 'u8[8192]{0}', space=vmem, size = 0x2000, scoped, tag = 'input window, operand 0']
    #allocation3 [shape = 's32[2]{0}', space=sflag, size = 0x8, scoped, tag = 'scoped memory for tpu_custom_call.1']
    #allocation4 [shape = 's32[2]{0}', space=sflag, size = 0x8, scoped, tag = 'scoped memory for tpu_custom_call.1']
    #allocation5 [shape = 'u8[32768]{0}', space=vmem, size = 0x8000, scoped, tag = 'input window, operand 1, single buffered']
    #allocation6 [shape = 's32[1]{0}', space=sflag, size = 0x4, scoped, tag = 'scoped memory for tpu_custom_call.1']
    #allocation7 [shape = 'u8[32768]{0}', space=vmem, size = 0x8000, scoped, tag = 'input window, operand 5, single buffered']
    #allocation8 [shape = 'u8[8192]{0}', space=vmem, size = 0x2000, scoped, tag = 'output window, operand 0']
    %11 = vsyncpa [#allocation3], 0
    %s12 = scalar_lea.sflag [#allocation3], 1
    %13 = vsyncpa %s12, 0
    %14 = vsyncpa [#allocation6], 0
    %15 = vsyncpa [#allocation4], 0
    %s16 = scalar_lea.sflag [#allocation4], 1
    %17 = vsyncpa %s16, 0
    loop: start=0, step=1, limit=4
    $region2: #{tpu_custom_call.1} parent=1 // loop_pre_header
      _
    $region3: #{tpu_custom_call.1} parent=1 // loop_header
      %s19 = sphi 0, %s23
      %p20 = scmp.ge.s32.totalorder %s19, 4
      %s29 = sphi 0, %s31
      %s32 = sphi 0, %s29
      %s33 = sphi 0, %s32
      %s49 = sphi 0, %s33
      %s53 = sphi 0, %s53
      %s55 = sphi 0, %s53
      %s56 = sphi 0, %s55
      %s70 = sphi 0, %s56
      %s74 = sphi 0, %s74
      %s76 = sphi 0, %s74
      %s77 = sphi 0, %s76
      %s91 = sphi 0, %s77
      %s95 = sphi 0, %s95
      %s97 = sphi 0, %s95
      %s98 = sphi 0, %s97
      %s112 = sphi 0, %s98
      %s116 = sphi 0, %s116
      %s118 = sphi 0, %s116
      %s119 = sphi 0, %s118
      %s133 = sphi 0, %s119
      %s137 = sphi 0, %s137
      %s139 = sphi 0, %s137
      %s140 = sphi 0, %s139
      %s154 = sphi 0, %s140
      %s160 = sphi 0, %s162
      %s163 = sphi 0, %s160
      %s164 = sphi 0, %s163
      %s180 = sphi 0, %s164
    $region4: #{tpu_custom_call.1} parent=1 // loop_header_branch
      %22 = sbr.rel (%p20) target = $region8
    $region5: #{tpu_custom_call.1} parent=1 // loop_body
      %s24 = ssub.s32 %s19, 1
      %s25 = ssub.s32 %s19, 2
      %s26 = sadd.s32 %s19, 1
      %s27 = ssub.s32 %s19, %s26
      %p28 = scmp.eq.s32.totalorder %s27, 0
      %s30 = sadd.s32 %s29, 1
      %s31 = scalar_select %p28, %s29, %s30
      %p34 = pneg %p28
      %p35 = scmp.eq.s32.totalorder %s19, 1
      %p36 = por %p34, %p35
      %p37 = scmp.ne.s32.totalorder %s29, %s32
      %p38 = scmp.eq.s32.totalorder %s19, 0
      %p39 = por %p37, %p38
      %p40 = scmp.ne.s32.totalorder %s29, %s32
      %p41 = scmp.eq.s32.totalorder %s24, 1
      %p42 = por %p40, %p41
      %p43 = scmp.ne.s32.totalorder %s32, %s33
      %p44 = scmp.eq.s32.totalorder %s24, 0
      %p45 = por %p43, %p44
      %p46 = scmp.ne.s32.totalorder %s32, %s33
      %p47 = scmp.eq.s32.totalorder %s25, 1
      %p48 = por %p46, %p47
      %p50 = scmp.ne.s32.totalorder %s33, %s49
      %p51 = scmp.eq.s32.totalorder %s25, 0
      %p52 = por %p50, %p51
      %s54 = sadd.s32 %s53, 1
      %p57 = scmp.eq.s32.totalorder %s19, 1
      %p58 = scmp.ne.s32.totalorder %s53, %s55
      %p59 = scmp.eq.s32.totalorder %s19, 0
      %p60 = por %p58, %p59
      %p61 = scmp.ne.s32.totalorder %s53, %s55
      %p62 = scmp.eq.s32.totalorder %s24, 1
      %p63 = por %p61, %p62
      %p64 = scmp.ne.s32.totalorder %s55, %s56
      %p65 = scmp.eq.s32.totalorder %s24, 0
      %p66 = por %p64, %p65
      %p67 = scmp.ne.s32.totalorder %s55, %s56
      %p68 = scmp.eq.s32.totalorder %s25, 1
      %p69 = por %p67, %p68
      %p71 = scmp.ne.s32.totalorder %s56, %s70
      %p72 = scmp.eq.s32.totalorder %s25, 0
      %p73 = por %p71, %p72
      %s75 = sadd.s32 %s74, 1
      %p78 = scmp.eq.s32.totalorder %s19, 1
      %p79 = scmp.ne.s32.totalorder %s74, %s76
      %p80 = scmp.eq.s32.totalorder %s19, 0
      %p81 = por %p79, %p80
      %p82 = scmp.ne.s32.totalorder %s74, %s76
      %p83 = scmp.eq.s32.totalorder %s24, 1
      %p84 = por %p82, %p83
      %p85 = scmp.ne.s32.totalorder %s76, %s77
      %p86 = scmp.eq.s32.totalorder %s24, 0
      %p87 = por %p85, %p86
      %p88 = scmp.ne.s32.totalorder %s76, %s77
      %p89 = scmp.eq.s32.totalorder %s25, 1
      %p90 = por %p88, %p89
      %p92 = scmp.ne.s32.totalorder %s77, %s91
      %p93 = scmp.eq.s32.totalorder %s25, 0
      %p94 = por %p92, %p93
      %s96 = sadd.s32 %s95, 1
      %p99 = scmp.eq.s32.totalorder %s19, 1
      %p100 = scmp.ne.s32.totalorder %s95, %s97
      %p101 = scmp.eq.s32.totalorder %s19, 0
      %p102 = por %p100, %p101
      %p103 = scmp.ne.s32.totalorder %s95, %s97
      %p104 = scmp.eq.s32.totalorder %s24, 1
      %p105 = por %p103, %p104
      %p106 = scmp.ne.s32.totalorder %s97, %s98
      %p107 = scmp.eq.s32.totalorder %s24, 0
      %p108 = por %p106, %p107
      %p109 = scmp.ne.s32.totalorder %s97, %s98
      %p110 = scmp.eq.s32.totalorder %s25, 1
      %p111 = por %p109, %p110
      %p113 = scmp.ne.s32.totalorder %s98, %s112
      %p114 = scmp.eq.s32.totalorder %s25, 0
      %p115 = por %p113, %p114
      %s117 = sadd.s32 %s116, 1
      %p120 = scmp.eq.s32.totalorder %s19, 1
      %p121 = scmp.ne.s32.totalorder %s116, %s118
      %p122 = scmp.eq.s32.totalorder %s19, 0
      %p123 = por %p121, %p122
      %p124 = scmp.ne.s32.totalorder %s116, %s118
      %p125 = scmp.eq.s32.totalorder %s24, 1
      %p126 = por %p124, %p125
      %p127 = scmp.ne.s32.totalorder %s118, %s119
      %p128 = scmp.eq.s32.totalorder %s24, 0
      %p129 = por %p127, %p128
      %p130 = scmp.ne.s32.totalorder %s118, %s119
      %p131 = scmp.eq.s32.totalorder %s25, 1
      %p132 = por %p130, %p131
      %p134 = scmp.ne.s32.totalorder %s119, %s133
      %p135 = scmp.eq.s32.totalorder %s25, 0
      %p136 = por %p134, %p135
      %s138 = sadd.s32 %s137, 1
      %p141 = scmp.eq.s32.totalorder %s19, 1
      %p142 = scmp.ne.s32.totalorder %s137, %s139
      %p143 = scmp.eq.s32.totalorder %s19, 0
      %p144 = por %p142, %p143
      %p145 = scmp.ne.s32.totalorder %s137, %s139
      %p146 = scmp.eq.s32.totalorder %s24, 1
      %p147 = por %p145, %p146
      %p148 = scmp.ne.s32.totalorder %s139, %s140
      %p149 = scmp.eq.s32.totalorder %s24, 0
      %p150 = por %p148, %p149
      %p151 = scmp.ne.s32.totalorder %s139, %s140
      %p152 = scmp.eq.s32.totalorder %s25, 1
      %p153 = por %p151, %p152
      %p155 = scmp.ne.s32.totalorder %s140, %s154
      %p156 = scmp.eq.s32.totalorder %s25, 0
      %p157 = por %p155, %p156
      %s158 = ssub.s32 %s19, %s26
      %p159 = scmp.eq.s32.totalorder %s158, 0
      %s161 = sadd.s32 %s160, 1
      %s162 = scalar_select %p159, %s160, %s161
      %p165 = pneg %p159
      %p166 = scmp.eq.s32.totalorder %s19, 1
      %p167 = por %p165, %p166
      %p168 = scmp.ne.s32.totalorder %s160, %s163
      %p169 = scmp.eq.s32.totalorder %s19, 0
      %p170 = por %p168, %p169
      %p171 = scmp.ne.s32.totalorder %s160, %s163
      %p172 = scmp.eq.s32.totalorder %s24, 1
      %p173 = por %p171, %p172
      %p174 = scmp.ne.s32.totalorder %s163, %s164
      %p175 = scmp.eq.s32.totalorder %s24, 0
      %p176 = por %p174, %p175
      %p177 = scmp.ne.s32.totalorder %s163, %s164
      %p178 = scmp.eq.s32.totalorder %s25, 1
      %p179 = por %p177, %p178
      %p181 = scmp.ne.s32.totalorder %s164, %s180
      %p182 = scmp.eq.s32.totalorder %s25, 0
      %p183 = por %p181, %p182
      %p184 = scmp.le.s32.totalorder 1, %s19
      %p185 = scmp.lt.s32.totalorder %s19, 3
      %p186 = pnand %p184, %p185
      %p187 = pneg %p186
      // Predicated region
      $region9: #{tpu_custom_call.1} parent=5 // pred_check
        _
      $region10: #{tpu_custom_call.1} parent=5 // pred_check_branch
        %189 = sbr.rel (%p186) target = $region12
      $region11: #{tpu_custom_call.1} parent=5 // pred_region
        %s190 = ssub.s32 %s19, 1
        // Predicated region
        $region13: #{tpu_custom_call.1} parent=11 // pred_check
          %p191 = pneg %p66
        $region14: #{tpu_custom_call.1} parent=11 // pred_check_branch
          %193 = sbr.rel (%p191) target = $region16
        $region15: #{tpu_custom_call.1} parent=11 // pred_region
          %s195 = ssub.s32 1024, 1024
          %196 = vsyncadd [#allocation6], %s195
          %s197 = sshll.u32 [#allocation5], 4
          %s198 = int_to_ptr.vmem [resolvable:$true] %s197
          %203 = dma.hbm_to_vmem [thread:$0]  %s1, 1024, %s198, [#allocation6], 64, 64, 4
        $region16: #{tpu_custom_call.1} parent=11 // pred_fallthru
          _
        // Predicated region
        $region17: #{tpu_custom_call.1} parent=11 // pred_check
          %p204 = pneg %p87
        $region18: #{tpu_custom_call.1} parent=11 // pred_check_branch
          %206 = sbr.rel (%p204) target = $region20
        $region19: #{tpu_custom_call.1} parent=11 // pred_region
          _
        $region20: #{tpu_custom_call.1} parent=11 // pred_fallthru
          _
        // Predicated region
        $region21: #{tpu_custom_call.1} parent=11 // pred_check
          %p207 = pneg %p108
        $region22: #{tpu_custom_call.1} parent=11 // pred_check_branch
          %209 = sbr.rel (%p207) target = $region24
        $region23: #{tpu_custom_call.1} parent=11 // pred_region
          _
        $region24: #{tpu_custom_call.1} parent=11 // pred_fallthru
          _
        // Predicated region
        $region25: #{tpu_custom_call.1} parent=11 // pred_check
          %p210 = pneg %p129
        $region26: #{tpu_custom_call.1} parent=11 // pred_check_branch
          %212 = sbr.rel (%p210) target = $region28
        $region27: #{tpu_custom_call.1} parent=11 // pred_region
          _
        $region28: #{tpu_custom_call.1} parent=11 // pred_fallthru
          _
        // Predicated region
        $region29: #{tpu_custom_call.1} parent=11 // pred_check
          %p213 = pneg %p150
        $region30: #{tpu_custom_call.1} parent=11 // pred_check_branch
          %215 = sbr.rel (%p213) target = $region32
        $region31: #{tpu_custom_call.1} parent=11 // pred_region
          %s217 = ssub.s32 1024, 1024
          %218 = vsyncadd [#allocation6], %s217
          %s219 = sshll.u32 [#allocation7], 4
          %s220 = int_to_ptr.vmem [resolvable:$true] %s219
          %225 = dma.hbm_to_vmem [thread:$0]  %s5, 1024, %s220, [#allocation6], 64, 64, 4
        $region32: #{tpu_custom_call.1} parent=11 // pred_fallthru
          _
      $region12: #{tpu_custom_call.1} parent=5 // pred_fallthru
        _
      %p226 = scmp.lt.s32.totalorder %s19, 2
      // Predicated region
      $region33: #{tpu_custom_call.1} parent=5 // pred_check
        %p227 = pneg %p226
      $region34: #{tpu_custom_call.1} parent=5 // pred_check_branch
        %229 = sbr.rel (%p227) target = $region36
      $region35: #{tpu_custom_call.1} parent=5 // pred_region
        // Predicated region
        $region37: #{tpu_custom_call.1} parent=35 // pred_check
          %p230 = pneg %p39
        $region38: #{tpu_custom_call.1} parent=35 // pred_check_branch
          %232 = sbr.rel (%p230) target = $region40
        $region39: #{tpu_custom_call.1} parent=35 // pred_region
          %s233 = sand.u32 %s29, 1
          %s234 = scalar_lea.sflag [#allocation3], %s233
          %s235 = sand.u32 %s29, 1
          %s236 = smul.addr %s235, 8
          %s237 = scalar_lea.vmem [#allocation2], %s236
          %s238 = smul.u32 2, %s19
          %s240 = ssub.s32 128, 128
          %241 = vsyncadd %s234, %s240
          %s242 = smul.addr %s238, 64
          %s243 = scalar_lea.hbm %s0, %s242
          %s244 = sshll.u32 %s237, 4
          %s245 = int_to_ptr.vmem [resolvable:$true] %s244
          %250 = dma.hbm_to_vmem [thread:$0]  %s243, 128, %s245, %s234, 64, 64, 4
        $region40: #{tpu_custom_call.1} parent=35 // pred_fallthru
          _
      $region36: #{tpu_custom_call.1} parent=5 // pred_fallthru
        _
      %p251 = scmp.le.s32.totalorder 1, %s19
      %p252 = scmp.lt.s32.totalorder %s19, 3
      %p253 = pnand %p251, %p252
      %p254 = pneg %p253
      // Predicated region
      $region41: #{tpu_custom_call.1} parent=5 // pred_check
        _
      $region42: #{tpu_custom_call.1} parent=5 // pred_check_branch
        %256 = sbr.rel (%p253) target = $region44
      $region43: #{tpu_custom_call.1} parent=5 // pred_region
        %s257 = ssub.s32 %s19, 1
        %s258 = sand.u32 %s32, 1
        %s259 = scalar_lea.sflag [#allocation3], %s258
        %s260 = sand.u32 %s32, 1
        %s261 = smul.addr %s260, 8
        %s262 = scalar_lea.vmem [#allocation2], %s261
        // Predicated region
        $region45: #{tpu_custom_call.1} parent=43 // pred_check
          %p263 = pneg %p45
        $region46: #{tpu_custom_call.1} parent=43 // pred_check_branch
          %265 = sbr.rel (%p263) target = $region48
        $region47: #{tpu_custom_call.1} parent=43 // pred_region
          %266 = dma.done %s259, 128
        $region48: #{tpu_custom_call.1} parent=43 // pred_fallthru
          _
        // Predicated region
        $region49: #{tpu_custom_call.1} parent=43 // pred_check
          %p267 = pneg %p66
        $region50: #{tpu_custom_call.1} parent=43 // pred_check_branch
          %269 = sbr.rel (%p267) target = $region52
        $region51: #{tpu_custom_call.1} parent=43 // pred_region
          %270 = dma.done [#allocation6], 1024
        $region52: #{tpu_custom_call.1} parent=43 // pred_fallthru
          _
        // Predicated region
        $region53: #{tpu_custom_call.1} parent=43 // pred_check
          %p271 = pneg %p150
        $region54: #{tpu_custom_call.1} parent=43 // pred_check_branch
          %273 = sbr.rel (%p271) target = $region56
        $region55: #{tpu_custom_call.1} parent=43 // pred_region
          %274 = dma.done [#allocation6], 1024
        $region56: #{tpu_custom_call.1} parent=43 // pred_fallthru
          _
        %s275 = sand.u32 %s32, 1
        %s276 = scalar_lea.sflag [#allocation3], %s275
        %s277 = sand.u32 %s32, 1
        %s278 = smul.addr %s277, 8
        %s279 = scalar_lea.vmem [#allocation2], %s278
        %p280 = pneg %p45
        %p281 = pneg %p42
        %p282 = pneg %p66
        %p283 = pneg %p63
        %p284 = pneg %p87
        %p285 = pneg %p84
        %p286 = pneg %p108
        %p287 = pneg %p105
        %p288 = pneg %p129
        %p289 = pneg %p126
        %p290 = pneg %p150
        %p291 = pneg %p147
        %p292 = pneg %p176
        %p293 = pneg %p173
        %s294 = sand.u32 %s163, 1
        %s295 = scalar_lea.sflag [#allocation4], %s294
        %s296 = sand.u32 %s163, 1
        %s297 = smul.addr %s296, 8
        %s298 = scalar_lea.vmem [#allocation8], %s297
        %s299 = smul.u32 2, %s24
        %s300 = smul.u32 2, %s24
        %v302 = vld [vmem:[%s262] sm:$0xf]
        %v303 = vld [vmem:[%s262 + $0x4] sm:$0xf]
        %v304 = vld [vmem:[#allocation5] sm:$0xf]
        %v305 = vld [vmem:[#allocation5 + $0x4] sm:$0xf]
        %v306 = vld [vmem:[#allocation5 + $0x8] sm:$0xf]
        %v307 = vld [vmem:[#allocation5 + $0xc] sm:$0xf]
        %v308 = vld [vmem:[#allocation5 + $0x10] sm:$0xf]
        %v309 = vld [vmem:[#allocation5 + $0x14] sm:$0xf]
        %v310 = vld [vmem:[#allocation5 + $0x18] sm:$0xf]
        %v311 = vld [vmem:[#allocation5 + $0x1c] sm:$0xf]
        %v312 = vld [vmem:[#allocation5 + $0x20] sm:$0xf]
        %v313 = vld [vmem:[#allocation5 + $0x24] sm:$0xf]
        %v314 = vld [vmem:[#allocation5 + $0x28] sm:$0xf]
        %v315 = vld [vmem:[#allocation5 + $0x2c] sm:$0xf]
        %v316 = vld [vmem:[#allocation5 + $0x30] sm:$0xf]
        %v317 = vld [vmem:[#allocation5 + $0x34] sm:$0xf]
        %v318 = vld [vmem:[#allocation5 + $0x38] sm:$0xf]
        %v319 = vld [vmem:[#allocation5 + $0x3c] sm:$0xf]
        %v320 = vld [vmem:[%s2] sm:$0x1]
        %v322 = vlaneseq
        %v323 = vshrl.u32 %v322, 7
        %v324 = vsub.s32 0, %v323
        %v325 = vrot.slane %v320, %v324
        %v329 = vunpack.c.l.b16 %v302
        %v330 = vunpack.c.l.b16 %v303
        %v331 = vpack.c.b16 %v330, %v329
        %v349 = vunpack.c.l.b16 %v304
        %v350 = vunpack.c.l.b16 %v305
        %v351 = vunpack.c.l.b16 %v306
        %v352 = vunpack.c.l.b16 %v307
        %v353 = vunpack.c.l.b16 %v308
        %v354 = vunpack.c.l.b16 %v309
        %v355 = vunpack.c.l.b16 %v310
        %v356 = vunpack.c.l.b16 %v311
        %v357 = vunpack.c.l.b16 %v312
        %v358 = vunpack.c.l.b16 %v313
        %v359 = vunpack.c.l.b16 %v314
        %v360 = vunpack.c.l.b16 %v315
        %v361 = vunpack.c.l.b16 %v316
        %v362 = vunpack.c.l.b16 %v317
        %v363 = vunpack.c.l.b16 %v318
        %v364 = vunpack.c.l.b16 %v319
        %v365 = vpack.c.b16 %v350, %v349
        %v366 = vpack.c.b16 %v352, %v351
        %v367 = vpack.c.b16 %v354, %v353
        %v368 = vpack.c.b16 %v356, %v355
        %v369 = vpack.c.b16 %v358, %v357
        %v370 = vpack.c.b16 %v360, %v359
        %v371 = vpack.c.b16 %v362, %v361
        %v372 = vpack.c.b16 %v364, %v363
        %381 = vmatprep.subr.bf16.mxu0 0
        %382 = vmatpush1.bf16.msra.mxu0 %v365
        %383 = vmatprep.subr.bf16.mxu0 0
        %384 = vmatpush1.bf16.msra.mxu0 %v366
        %385 = vmatprep.subr.bf16.mxu0 0
        %386 = vmatpush1.bf16.msra.mxu0 %v367
        %387 = vmatprep.subr.bf16.mxu0 0
        %388 = vmatpush1.bf16.msra.mxu0 %v368
        %389 = vmatprep.subr.bf16.mxu0 0
        %390 = vmatpush1.bf16.msra.mxu0 %v369
        %391 = vmatprep.subr.bf16.mxu0 0
        %392 = vmatpush1.bf16.msra.mxu0 %v370
        %393 = vmatprep.subr.bf16.mxu0 0
        %394 = vmatpush1.bf16.msra.mxu0 %v371
        %395 = vmatprep.subr.bf16.mxu0 0
        %396 = vmatpush1.bf16.msra.mxu0 %v372
        %397 = vmatprep.subr.bf16.mxu0 0
        %398 = vmatpush1.bf16.msra.mxu0 0
        %399 = vmatprep.subr.bf16.mxu0 0
        %400 = vmatpush1.bf16.msra.mxu0 0
        %401 = vmatprep.subr.bf16.mxu0 0
        %402 = vmatpush1.bf16.msra.mxu0 0
        %403 = vmatprep.subr.bf16.mxu0 0
        %404 = vmatpush1.bf16.msra.mxu0 0
        %405 = vmatprep.subr.bf16.mxu0 0
        %406 = vmatpush1.bf16.msra.mxu0 0
        %407 = vmatprep.subr.bf16.mxu0 0
        %408 = vmatpush1.bf16.msra.mxu0 0
        %409 = vmatprep.subr.bf16.mxu0 0
        %410 = vmatpush1.bf16.msra.mxu0 0
        %411 = vmatprep.subr.bf16.mxu0 0
        %412 = vmatpush1.bf16.msra.mxu0 0
        %413 = vmatprep.mubr.bf16.mxu0 0
        %414 = vmatmul.mubr.bf16.gmra.mrb[0].mxu0 %v331
        %v415 = vpop.f32.mrb[0].mxu0
        %v416 = vadd.f32 %v325, %v415
        %v417 = vpop.f32.mrb[0].mxu0
        %v418 = vpop.f32.mrb[0].mxu0
        %v419 = vadd.f32 %v325, %v418
        %v420 = vpop.f32.mrb[0].mxu0
        %421 = vdwg.mxu0
        %422 = vadd.xlane.f32.xlu0 %v416
        %v423 = vpop.xlane.xlu0 %422
        %424 = vadd.xlane.f32.xlu0 %v419
        %v425 = vpop.xlane.xlu0 %424
        %v426 = vmul.f32 %v423, 0.03125
        %v427 = vmul.f32 %v425, 0.03125
        %v428 = vmul.f32 %v416, %v416
        %v429 = vmul.f32 %v419, %v419
        %430 = vadd.xlane.f32.xlu0 %v428
        %v431 = vpop.xlane.xlu0 %430
        %432 = vadd.xlane.f32.xlu0 %v429
        %v433 = vpop.xlane.xlu0 %432
        %v434 = vmul.f32 %v431, 0.03125
        %v435 = vmul.f32 %v433, 0.03125
        %v436 = vmul.f32 %v426, %v426
        %v437 = vmul.f32 %v427, %v427
        %v438 = vsub.f32 %v434, %v436
        %v439 = vsub.f32 %v435, %v437
        %v440 = vmax.f32 %v438, 0.0
        %v441 = vmax.f32 %v439, 0.0
        %v442 = vsub.f32 %v416, %v426
        %v443 = vsub.f32 %v419, %v427
        %v444 = vadd.f32 %v440, 1e-05
        %v445 = vadd.f32 %v441, 1e-05
        %v446 = vrsqrt.pop %v444
        %v447 = vrsqrt.pop %v445
        %v448 = vmul.f32 %v442, %v446
        %v449 = vmul.f32 %v443, %v447
        %v450 = vld [vmem:[%s3] sm:$0x1]
        %v452 = vlaneseq
        %v453 = vshrl.u32 %v452, 7
        %v454 = vsub.s32 0, %v453
        %v455 = vrot.slane %v450, %v454
        %v457 = vmul.f32 %v448, %v455
        %v458 = vmul.f32 %v449, %v455
        %v459 = vld [vmem:[%s4] sm:$0x1]
        %v461 = vlaneseq
        %v462 = vshrl.u32 %v461, 7
        %v463 = vsub.s32 0, %v462
        %v464 = vrot.slane %v459, %v463
        %v466 = vadd.f32 %v457, %v464
        %v467 = vadd.f32 %v458, %v464
        %v468 = vpack.c.bf16 %v467, %v466
        %v469 = vld [vmem:[#allocation7] sm:$0xf]
        %v470 = vld [vmem:[#allocation7 + $0x4] sm:$0xf]
        %v471 = vld [vmem:[#allocation7 + $0x8] sm:$0xf]
        %v472 = vld [vmem:[#allocation7 + $0xc] sm:$0xf]
        %v473 = vld [vmem:[#allocation7 + $0x10] sm:$0xf]
        %v474 = vld [vmem:[#allocation7 + $0x14] sm:$0xf]
        %v475 = vld [vmem:[#allocation7 + $0x18] sm:$0xf]
        %v476 = vld [vmem:[#allocation7 + $0x1c] sm:$0xf]
        %v477 = vld [vmem:[#allocation7 + $0x20] sm:$0xf]
        %v478 = vld [vmem:[#allocation7 + $0x24] sm:$0xf]
        %v479 = vld [vmem:[#allocation7 + $0x28] sm:$0xf]
        %v480 = vld [vmem:[#allocation7 + $0x2c] sm:$0xf]
        %v481 = vld [vmem:[#allocation7 + $0x30] sm:$0xf]
        %v482 = vld [vmem:[#allocation7 + $0x34] sm:$0xf]
        %v483 = vld [vmem:[#allocation7 + $0x38] sm:$0xf]
        %v484 = vld [vmem:[#allocation7 + $0x3c] sm:$0xf]
        %v501 = vunpack.c.l.b16 %v469
        %v502 = vunpack.c.l.b16 %v470
        %v503 = vunpack.c.l.b16 %v471
        %v504 = vunpack.c.l.b16 %v472
        %v505 = vunpack.c.l.b16 %v473
        %v506 = vunpack.c.l.b16 %v474
        %v507 = vunpack.c.l.b16 %v475
        %v508 = vunpack.c.l.b16 %v476
        %v509 = vunpack.c.l.b16 %v477
        %v510 = vunpack.c.l.b16 %v478
        %v511 = vunpack.c.l.b16 %v479
        %v512 = vunpack.c.l.b16 %v480
        %v513 = vunpack.c.l.b16 %v481
        %v514 = vunpack.c.l.b16 %v482
        %v515 = vunpack.c.l.b16 %v483
        %v516 = vunpack.c.l.b16 %v484
        %v517 = vpack.c.b16 %v502, %v501
        %v518 = vpack.c.b16 %v504, %v503
        %v519 = vpack.c.b16 %v506, %v505
        %v520 = vpack.c.b16 %v508, %v507
        %v521 = vpack.c.b16 %v510, %v509
        %v522 = vpack.c.b16 %v512, %v511
        %v523 = vpack.c.b16 %v514, %v513
        %v524 = vpack.c.b16 %v516, %v515
        %533 = vmatprep.subr.bf16.mxu0 0
        %534 = vmatpush1.bf16.msra.mxu0 %v517
        %535 = vmatprep.subr.bf16.mxu0 0
        %536 = vmatpush1.bf16.msra.mxu0 %v518
        %537 = vmatprep.subr.bf16.mxu0 0
        %538 = vmatpush1.bf16.msra.mxu0 %v519
        %539 = vmatprep.subr.bf16.mxu0 0
        %540 = vmatpush1.bf16.msra.mxu0 %v520
        %541 = vmatprep.subr.bf16.mxu0 0
        %542 = vmatpush1.bf16.msra.mxu0 %v521
        %543 = vmatprep.subr.bf16.mxu0 0
        %544 = vmatpush1.bf16.msra.mxu0 %v522
        %545 = vmatprep.subr.bf16.mxu0 0
        %546 = vmatpush1.bf16.msra.mxu0 %v523
        %547 = vmatprep.subr.bf16.mxu0 0
        %548 = vmatpush1.bf16.msra.mxu0 %v524
        %549 = vmatprep.subr.bf16.mxu0 0
        %550 = vmatpush1.bf16.msra.mxu0 0
        %551 = vmatprep.subr.bf16.mxu0 0
        %552 = vmatpush1.bf16.msra.mxu0 0
        %553 = vmatprep.subr.bf16.mxu0 0
        %554 = vmatpush1.bf16.msra.mxu0 0
        %555 = vmatprep.subr.bf16.mxu0 0
        %556 = vmatpush1.bf16.msra.mxu0 0
        %557 = vmatprep.subr.bf16.mxu0 0
        %558 = vmatpush1.bf16.msra.mxu0 0
        %559 = vmatprep.subr.bf16.mxu0 0
        %560 = vmatpush1.bf16.msra.mxu0 0
        %561 = vmatprep.subr.bf16.mxu0 0
        %562 = vmatpush1.bf16.msra.mxu0 0
        %563 = vmatprep.subr.bf16.mxu0 0
        %564 = vmatpush1.bf16.msra.mxu0 0
        %565 = vmatprep.mubr.bf16.mxu0 0
        %566 = vmatmul.mubr.bf16.gmra.mrb[0].mxu0 %v468
        %v567 = vpop.f32.mrb[0].mxu0
        %v568 = vadd.f32 0.0, %v567
        %v569 = vpop.f32.mrb[0].mxu0
        %v570 = vpop.f32.mrb[0].mxu0
        %v571 = vadd.f32 0.0, %v570
        %v572 = vpop.f32.mrb[0].mxu0
        %573 = vdwg.mxu0
        %v574 = vpack.c.bf16 %v571, %v568
        %v576 = vunpack.c.l.b16 %v574
        %v577 = vunpack.c.h.b16 %v574
        %v578 = vpack.c.b16 %v576, %v576
        %v579 = vpack.c.b16 %v577, %v577
        %582 = vst [vmem:[%s298] sm:$0xf] %v578
        %583 = vst [vmem:[%s298 + $0x4] sm:$0xf] %v579
        %s584 = sand.u32 %s163, 1
        %s585 = scalar_lea.sflag [#allocation4], %s584
        %s586 = sand.u32 %s163, 1
        %s587 = smul.addr %s586, 8
        %s588 = scalar_lea.vmem [#allocation8], %s587
        // Predicated region
        $region57: #{tpu_custom_call.1} parent=43 // pred_check
          %p589 = pneg %p173
        $region58: #{tpu_custom_call.1} parent=43 // pred_check_branch
          %591 = sbr.rel (%p589) target = $region60
        $region59: #{tpu_custom_call.1} parent=43 // pred_region
          %s592 = smul.u32 2, %s24
          %s594 = ssub.s32 128, 128
          %595 = vsyncadd %s585, %s594
          %s596 = smul.addr %s592, 64
          %s597 = scalar_lea.hbm %s6, %s596
          %s598 = sshll.u32 %s588, 4
          %s599 = int_to_ptr.vmem [resolvable:$true] %s598
          %604 = dma.vmem_to_hbm [thread:$0]  %s599, 128, %s597, %s585, 64, 64, 4
        $region60: #{tpu_custom_call.1} parent=43 // pred_fallthru
          _
      $region44: #{tpu_custom_call.1} parent=5 // pred_fallthru
        _
      %p605 = scmp.le.s32.totalorder 2, %s19
      // Predicated region
      $region61: #{tpu_custom_call.1} parent=5 // pred_check
        %p606 = pneg %p605
      $region62: #{tpu_custom_call.1} parent=5 // pred_check_branch
        %608 = sbr.rel (%p606) target = $region64
      $region63: #{tpu_custom_call.1} parent=5 // pred_region
        %s609 = ssub.s32 %s19, 2
        // Predicated region
        $region65: #{tpu_custom_call.1} parent=63 // pred_check
          %p610 = pneg %p179
        $region66: #{tpu_custom_call.1} parent=63 // pred_check_branch
          %612 = sbr.rel (%p610) target = $region68
        $region67: #{tpu_custom_call.1} parent=63 // pred_region
          %s613 = sand.u32 %s164, 1
          %s614 = scalar_lea.sflag [#allocation4], %s613
          %s615 = sand.u32 %s164, 1
          %s616 = smul.addr %s615, 8
          %s617 = scalar_lea.vmem [#allocation8], %s616
          %618 = dma.done %s614, 128
        $region68: #{tpu_custom_call.1} parent=63 // pred_fallthru
          _
      $region64: #{tpu_custom_call.1} parent=5 // pred_fallthru
        _
    $region6: #{tpu_custom_call.1} parent=1 // loop_footer
      %s23 = sadd.s32 1, %s19
    $region7: #{tpu_custom_call.1} parent=1 // loop_footer_branch
      %18 = sbr.rel target = $region3
    $region8: #{tpu_custom_call.1} parent=1 // loop_exit
      _
    %619 = vsyncpa [#allocation3], 1
    %s620 = scalar_lea.sflag [#allocation3], 1
    %621 = vsyncpa %s620, 1
    %622 = vsyncpa [#allocation6], 1
    %623 = vsyncpa [#allocation4], 1
    %s624 = scalar_lea.sflag [#allocation4], 1
    %625 = vsyncpa %s624, 1

</llo_original>
